<compile_context>
chip_gen: v6e
topology: v6e:2x2x1
jax: 0.10.0
libtpu: 0.0.40
codegen_flags: <defaults>
</compile_context>

<pallas_src>
import functools

import jax
import jax.numpy as jnp
import numpy as np
from jax.experimental import pallas as pl
from jax.experimental.pallas import tpu as pltpu

LANES = 128
LOG_CLAMP = -100.0  # PyTorch binary_cross_entropy clamps log terms at -100


def _dice_bce_kernel(x_ref, t_ref, o_ref, acc_p, acc_t, acc_pt, acc_b, *,
                     n_valid, steps, block_rows):
    # x_ref / t_ref : VMEM (block_rows, 128) tiles in their NATIVE dtype
    # o_ref         : VMEM (4, 8, 128) per-core partial sums (written on last inner step)
    # acc_*         : VMEM (8, 128) f32 running partials: p, t, p*t, bce_i
    ci = pl.program_id(0)   # parallel chunk (sharded across TensorCores on v7x)
    si = pl.program_id(1)   # sequential steps inside the chunk

    @pl.when(si == 0)
    def _init():
        acc_p[...] = jnp.zeros_like(acc_p)
        acc_t[...] = jnp.zeros_like(acc_t)
        acc_pt[...] = jnp.zeros_like(acc_pt)
        acc_b[...] = jnp.zeros_like(acc_b)

    x = x_ref[...].astype(jnp.float32)
    t = t_ref[...].astype(jnp.float32)

    # 2 transcendentals per element (EUP): exp(-|x|) and log(1+e); exact reciprocal
    # (keeps 1e-5 agreement with the reference).
    e = jnp.exp(-jnp.abs(x))
    inv_1pe = 1.0 / (1.0 + e)
    p = jnp.where(x >= 0, 1.0, e) * inv_1pe                 # sigmoid(x)
    softplus_neg_abs = jnp.log(1.0 + e)                     # softplus(-|x|)
    log_p = jnp.maximum(-(jnp.maximum(-x, 0.0) + softplus_neg_abs), LOG_CLAMP)
    log_1mp = jnp.maximum(-(jnp.maximum(x, 0.0) + softplus_neg_abs), LOG_CLAMP)
    bce_i = -(t * log_p + (1.0 - t) * log_1mp)
    pt = p * t

    nv = block_rows // 8
    blk_elems = block_rows * LANES
    blk_start = (ci * steps + si) * blk_elems               # virtual (unclamped) position
    needs_mask = blk_start + blk_elems > n_valid

    def _accumulate(pv, tv, ptv, bv):
        # pure-VPU per-block reduction: sum over the vreg axis -> one (8,128) tile each
        acc_p[...] += jnp.sum(pv.reshape(nv, 8, LANES), axis=0)
        acc_t[...] += jnp.sum(tv.reshape(nv, 8, LANES), axis=0)
        acc_pt[...] += jnp.sum(ptv.reshape(nv, 8, LANES), axis=0)
        acc_b[...] += jnp.sum(bv.reshape(nv, 8, LANES), axis=0)

    @pl.when(jnp.logical_not(needs_mask))
    def _fast():  # fully valid block: no mask arithmetic at all
        _accumulate(p, t, pt, bce_i)

    @pl.when(needs_mask)
    def _masked():  # ragged tail / duplicated virtual block: mask by global position
        row_ids = jax.lax.broadcasted_iota(jnp.int32, (block_rows, LANES), 0)
        lane_ids = jax.lax.broadcasted_iota(jnp.int32, (block_rows, LANES), 1)
        mask = (blk_start + row_ids * LANES + lane_ids) < n_valid
        zero = jnp.zeros_like(p)
        _accumulate(jnp.where(mask, p, zero), jnp.where(mask, t, zero),
                    jnp.where(mask, pt, zero), jnp.where(mask, bce_i, zero))

    @pl.when(si == steps - 1)
    def _finalize():
        o_ref[0] = acc_p[...]
        o_ref[1] = acc_t[...]
        o_ref[2] = acc_pt[...]
        o_ref[3] = acc_b[...]


@functools.partial(jax.jit, static_argnames=("smooth", "block_rows", "num_par"))
def dice_bce_loss(logits, targets, smooth=1.0, block_rows=2048, num_par=2):
    n = logits.size
    if n >= 2 ** 31:
        # TODO(synk): int32 flat-index mask / divisor would overflow; needs a chunked wrapper.
        raise ValueError("dice_bce_loss supports up to 2**31 - 1 elements")

    x = logits.reshape(-1)
    t = targets.reshape(-1)

    # Pad only to lane width (and only when needed) so we can view as (rows, 128).
    pad = (-n) % LANES
    if pad:
        x = jnp.pad(x, (0, pad))
        t = jnp.pad(t, (0, pad))
    rows = (n + pad) // LANES

    block_rows = max(8, min(int(block_rows), ((rows + 7) // 8) * 8))
    block_rows = ((block_rows + 7) // 8) * 8                 # multiple of 8 sublanes
    x2 = x.reshape(rows, LANES)
    t2 = t.reshape(rows, LANES)

    total_blocks = pl.cdiv(rows, block_rows)
    num_par = max(1, min(int(num_par), total_blocks))        # outer "parallel" chunks
    steps = pl.cdiv(total_blocks, num_par)                   # inner sequential steps

    def in_map(ci, si):
        # Clamp so virtual trailing blocks of the last chunk re-read the last real block;
        # their contributions are zeroed by the position mask inside the kernel.
        return (jnp.minimum(ci * steps + si, total_blocks - 1), 0)

    kernel = functools.partial(_dice_bce_kernel, n_valid=n, steps=steps,
                               block_rows=block_rows)

    elem_bytes = x2.dtype.itemsize + t2.dtype.itemsize
    parts = pl.pallas_call(
        kernel,
        out_shape=jax.ShapeDtypeStruct((num_par, 4, 8, LANES), jnp.float32),
        grid=(num_par, steps),
        in_specs=[
            pl.BlockSpec((block_rows, LANES), in_map),
            pl.BlockSpec((block_rows, LANES), in_map),
        ],
        out_specs=pl.BlockSpec((None, 4, 8, LANES), lambda ci, si: (ci, 0, 0, 0)),
        scratch_shapes=[pltpu.VMEM((8, LANES), jnp.float32)] * 4,
        compiler_params=pltpu.CompilerParams(
            dimension_semantics=("parallel", "arbitrary")),
        cost_estimate=pl.CostEstimate(
            flops=20 * n, transcendentals=2 * n,
            bytes_accessed=rows * LANES * elem_bytes + num_par * 4 * 8 * LANES * 4),
    )(x2, t2)

    # Tiny scalar epilogue (a few thousand floats) in the wrapper.
    sums = jnp.sum(parts, axis=(0, 2, 3))                    # (4,): sum_p, sum_t, sum_pt, sum_bce
    sum_p, sum_t, sum_pt, sum_bce = sums[0], sums[1], sums[2], sums[3]
    bce = sum_bce / n
    dice = 1.0 - (2.0 * sum_pt + smooth) / (sum_p + sum_t + smooth)
    return bce + dice


def _reference(logits, targets, smooth=1.0):
    # pure-JAX reference matching the PyTorch module
    p = jax.nn.sigmoid(logits.astype(jnp.float32)).reshape(-1)
    t = targets.astype(jnp.float32).reshape(-1)
    inter = jnp.sum(p * t)
    dice = 1.0 - (2.0 * inter + smooth) / (jnp.sum(p) + jnp.sum(t) + smooth)
    log_p = jnp.maximum(jnp.log(p), -100.0)
    log_1mp = jnp.maximum(jnp.log(1.0 - p), -100.0)
    bce = -jnp.mean(t * log_p + (1.0 - t) * log_1mp)
    return bce + dice


if __name__ == "__main__":
    key = jax.random.PRNGKey(0)
    kx, kt, kx2, kt2 = jax.random.split(key, 4)

    # Segmentation-style loss input: (N, C, H, W) = (2, 4, 16, 16).
    # block_rows=8 -> two blocks -> exercises the 2-way parallel chunk split.
    logits = jax.random.normal(kx, (2, 4, 16, 16), jnp.float32)
    targets = jax.random.bernoulli(kt, 0.4, (2, 4, 16, 16)).astype(jnp.float32)
    out = jax.block_until_ready(dice_bce_loss(logits, targets, block_rows=8))
    ref = jax.block_until_ready(_reference(logits, targets))
    np.testing.assert_allclose(np.asarray(out), np.asarray(ref), rtol=1e-5, atol=1e-5)

    # Ragged case: n = 2*3*15*17 = 1530 (not a multiple of 128) -> exercises the
    # lane pad + masked tail + partial final block path.
    logits2 = jax.random.normal(kx2, (2, 3, 15, 17), jnp.float32)
    targets2 = jax.random.bernoulli(kt2, 0.3, (2, 3, 15, 17)).astype(jnp.float32)
    out2 = jax.block_until_ready(dice_bce_loss(logits2, targets2, block_rows=8))
    ref2 = jax.block_until_ready(_reference(logits2, targets2))
    np.testing.assert_allclose(np.asarray(out2), np.asarray(ref2), rtol=1e-5, atol=1e-5)

    print("KERNEL_OK")
</pallas_src>

<mosaic_0001>
module attributes {stable_mosaic.version = 11 : i64} {
  func.func @_dice_bce_kernel(%arg0: i32, %arg1: i32, %arg2: memref<8x128xf32, #tpu.memory_space<vmem>>, %arg3: memref<8x128xf32, #tpu.memory_space<vmem>>, %arg4: memref<1x4x8x128xf32, #tpu.memory_space<vmem>>, %arg5: memref<8x128xf32, #tpu.memory_space<vmem>>, %arg6: memref<8x128xf32, #tpu.memory_space<vmem>>, %arg7: memref<8x128xf32, #tpu.memory_space<vmem>>, %arg8: memref<8x128xf32, #tpu.memory_space<vmem>>) attributes {dimension_semantics = [#tpu.dimension_semantics<parallel>, #tpu.dimension_semantics<arbitrary>], iteration_bounds = array<i64: 2, 1>, scalar_prefetch = 0 : i64, scratch_operands = 4 : i64, tpu.core_type = #tpu.core_type<tc>, window_params = [{transform_indices = @transform_0, window_bounds = array<i64: 8, 128>}, {transform_indices = @transform_1, window_bounds = array<i64: 8, 128>}, {transform_indices = @transform_2, window_bounds = array<i64: 1, 4, 8, 128>}]} {
    %c0_i32 = arith.constant 0 : i32
    %0 = arith.cmpi eq, %arg1, %c0_i32 : i32
    %1 = arith.extui %0 : i1 to i32
    %c0_i32_0 = arith.constant 0 : i32
    %2 = arith.cmpi ne, %1, %c0_i32_0 : i32
    scf.if %2 {
      %cst_23 = arith.constant 0.000000e+00 : f32
      %58 = vector.broadcast %cst_23 : f32 to vector<8x128xf32>
      %c0_24 = arith.constant 0 : index
      %c0_25 = arith.constant 0 : index
      %59 = vector.load %arg5[%c0_24, %c0_25] : memref<8x128xf32, #tpu.memory_space<vmem>>, vector<8x128xf32>
      tpu.vector_store %arg5[%c0_24, %c0_25], %58 {strides = array<i32>} : memref<8x128xf32, #tpu.memory_space<vmem>>, vector<8x128xf32>,
      %cst_26 = arith.constant 0.000000e+00 : f32
      %60 = vector.broadcast %cst_26 : f32 to vector<8x128xf32>
      %c0_27 = arith.constant 0 : index
      %c0_28 = arith.constant 0 : index
      %61 = vector.load %arg6[%c0_27, %c0_28] : memref<8x128xf32, #tpu.memory_space<vmem>>, vector<8x128xf32>
      tpu.vector_store %arg6[%c0_27, %c0_28], %60 {strides = array<i32>} : memref<8x128xf32, #tpu.memory_space<vmem>>, vector<8x128xf32>,
      %cst_29 = arith.constant 0.000000e+00 : f32
      %62 = vector.broadcast %cst_29 : f32 to vector<8x128xf32>
      %c0_30 = arith.constant 0 : index
      %c0_31 = arith.constant 0 : index
      %63 = vector.load %arg7[%c0_30, %c0_31] : memref<8x128xf32, #tpu.memory_space<vmem>>, vector<8x128xf32>
      tpu.vector_store %arg7[%c0_30, %c0_31], %62 {strides = array<i32>} : memref<8x128xf32, #tpu.memory_space<vmem>>, vector<8x128xf32>,
      %cst_32 = arith.constant 0.000000e+00 : f32
      %64 = vector.broadcast %cst_32 : f32 to vector<8x128xf32>
      %c0_33 = arith.constant 0 : index
      %c0_34 = arith.constant 0 : index
      %65 = vector.load %arg8[%c0_33, %c0_34] : memref<8x128xf32, #tpu.memory_space<vmem>>, vector<8x128xf32>
      tpu.vector_store %arg8[%c0_33, %c0_34], %64 {strides = array<i32>} : memref<8x128xf32, #tpu.memory_space<vmem>>, vector<8x128xf32>,
    } else {
    }
    %c0 = arith.constant 0 : index
    %c0_1 = arith.constant 0 : index
    %3 = vector.load %arg2[%c0, %c0_1] : memref<8x128xf32, #tpu.memory_space<vmem>>, vector<8x128xf32>
    %c0_2 = arith.constant 0 : index
    %c0_3 = arith.constant 0 : index
    %4 = vector.load %arg3[%c0_2, %c0_3] : memref<8x128xf32, #tpu.memory_space<vmem>>, vector<8x128xf32>
    %5 = math.absf %3 : vector<8x128xf32>
    %cst = arith.constant 0.000000e+00 : f32
    %6 = vector.broadcast %cst : f32 to vector<8x128xf32>
    %7 = arith.subf %6, %5 : vector<8x128xf32>
    %8 = math.exp %7 : vector<8x128xf32>
    %cst_4 = arith.constant 1.000000e+00 : f32
    %9 = vector.broadcast %cst_4 : f32 to vector<8x128xf32>
    %10 = arith.addf %9, %8 : vector<8x128xf32>
    %cst_5 = arith.constant 1.000000e+00 : f32
    %11 = vector.broadcast %cst_5 : f32 to vector<8x128xf32>
    %12 = arith.divf %11, %10 : vector<8x128xf32>
    %cst_6 = arith.constant 0.000000e+00 : f32
    %13 = vector.broadcast %cst_6 : f32 to vector<8x128xf32>
    %14 = arith.cmpf oge, %3, %13 : vector<8x128xf32>
    %cst_7 = arith.constant 1.000000e+00 : f32
    %15 = vector.broadcast %cst_7 : f32 to vector<8x128xf32>
    %16 = arith.select %14, %15, %8 : vector<8x128xi1>, vector<8x128xf32>
    %17 = arith.mulf %16, %12 : vector<8x128xf32>
    %cst_8 = arith.constant 1.000000e+00 : f32
    %18 = vector.broadcast %cst_8 : f32 to vector<8x128xf32>
    %19 = arith.addf %18, %8 : vector<8x128xf32>
    %20 = math.log %19 : vector<8x128xf32>
    %cst_9 = arith.constant 0.000000e+00 : f32
    %21 = vector.broadcast %cst_9 : f32 to vector<8x128xf32>
    %22 = arith.subf %21, %3 : vector<8x128xf32>
    %cst_10 = arith.constant 0.000000e+00 : f32
    %23 = vector.broadcast %cst_10 : f32 to vector<8x128xf32>
    %24 = arith.maximumf %22, %23 : vector<8x128xf32>
    %25 = arith.addf %24, %20 : vector<8x128xf32>
    %cst_11 = arith.constant 0.000000e+00 : f32
    %26 = vector.broadcast %cst_11 : f32 to vector<8x128xf32>
    %27 = arith.subf %26, %25 : vector<8x128xf32>
    %cst_12 = arith.constant -1.000000e+02 : f32
    %28 = vector.broadcast %cst_12 : f32 to vector<8x128xf32>
    %29 = arith.maximumf %27, %28 : vector<8x128xf32>
    %cst_13 = arith.constant 0.000000e+00 : f32
    %30 = vector.broadcast %cst_13 : f32 to vector<8x128xf32>
    %31 = arith.maximumf %3, %30 : vector<8x128xf32>
    %32 = arith.addf %31, %20 : vector<8x128xf32>
    %cst_14 = arith.constant 0.000000e+00 : f32
    %33 = vector.broadcast %cst_14 : f32 to vector<8x128xf32>
    %34 = arith.subf %33, %32 : vector<8x128xf32>
    %cst_15 = arith.constant -1.000000e+02 : f32
    %35 = vector.broadcast %cst_15 : f32 to vector<8x128xf32>
    %36 = arith.maximumf %34, %35 : vector<8x128xf32>
    %37 = arith.mulf %4, %29 : vector<8x128xf32>
    %cst_16 = arith.constant 1.000000e+00 : f32
    %38 = vector.broadcast %cst_16 : f32 to vector<8x128xf32>
    %39 = arith.subf %38, %4 : vector<8x128xf32>
    %40 = arith.mulf %39, %36 : vector<8x128xf32>
    %41 = arith.addf %37, %40 : vector<8x128xf32>
    %cst_17 = arith.constant 0.000000e+00 : f32
    %42 = vector.broadcast %cst_17 : f32 to vector<8x128xf32>
    %43 = arith.subf %42, %41 : vector<8x128xf32>
    %44 = arith.mulf %17, %4 : vector<8x128xf32>
    %c1_i32 = arith.constant 1 : i32
    %45 = arith.muli %arg0, %c1_i32 : i32
    %46 = arith.addi %45, %arg1 : i32
    %c1024_i32 = arith.constant 1024 : i32
    %47 = arith.muli %46, %c1024_i32 : i32
    %c1024_i32_18 = arith.constant 1024 : i32
    %48 = arith.addi %47, %c1024_i32_18 : i32
    %c2048_i32 = arith.constant 2048 : i32
    %49 = arith.cmpi sgt, %48, %c2048_i32 : i32
    %true = arith.constant true
    %50 = arith.xori %49, %true : i1
    %51 = arith.extui %50 : i1 to i32
    %c0_i32_19 = arith.constant 0 : i32
    %52 = arith.cmpi ne, %51, %c0_i32_19 : i32
    scf.if %52 {
      %c0_23 = arith.constant 0 : index
      %c0_24 = arith.constant 0 : index
      %58 = vector.load %arg5[%c0_23, %c0_24] : memref<8x128xf32, #tpu.memory_space<vmem>>, vector<8x128xf32>
      %59 = vector.shape_cast %17 : vector<8x128xf32> to vector<1x8x128xf32>
      %cst_25 = arith.constant dense<0.000000e+00> : vector<8x128xf32>
      %60 = vector.multi_reduction <add>, %59, %cst_25 [0] : vector<1x8x128xf32> to vector<8x128xf32>
      %61 = arith.addf %58, %60 : vector<8x128xf32>
      %c0_26 = arith.constant 0 : index
      %c0_27 = arith.constant 0 : index
      %62 = vector.load %arg5[%c0_26, %c0_27] : memref<8x128xf32, #tpu.memory_space<vmem>>, vector<8x128xf32>
      tpu.vector_store %arg5[%c0_26, %c0_27], %61 {strides = array<i32>} : memref<8x128xf32, #tpu.memory_space<vmem>>, vector<8x128xf32>,
      %c0_28 = arith.constant 0 : index
      %c0_29 = arith.constant 0 : index
      %63 = vector.load %arg6[%c0_28, %c0_29] : memref<8x128xf32, #tpu.memory_space<vmem>>, vector<8x128xf32>
      %64 = vector.shape_cast %4 : vector<8x128xf32> to vector<1x8x128xf32>
      %cst_30 = arith.constant dense<0.000000e+00> : vector<8x128xf32>
      %65 = vector.multi_reduction <add>, %64, %cst_30 [0] : vector<1x8x128xf32> to vector<8x128xf32>
      %66 = arith.addf %63, %65 : vector<8x128xf32>
      %c0_31 = arith.constant 0 : index
      %c0_32 = arith.constant 0 : index
      %67 = vector.load %arg6[%c0_31, %c0_32] : memref<8x128xf32, #tpu.memory_space<vmem>>, vector<8x128xf32>
      tpu.vector_store %arg6[%c0_31, %c0_32], %66 {strides = array<i32>} : memref<8x128xf32, #tpu.memory_space<vmem>>, vector<8x128xf32>,
      %c0_33 = arith.constant 0 : index
      %c0_34 = arith.constant 0 : index
      %68 = vector.load %arg7[%c0_33, %c0_34] : memref<8x128xf32, #tpu.memory_space<vmem>>, vector<8x128xf32>
      %69 = vector.shape_cast %44 : vector<8x128xf32> to vector<1x8x128xf32>
      %cst_35 = arith.constant dense<0.000000e+00> : vector<8x128xf32>
      %70 = vector.multi_reduction <add>, %69, %cst_35 [0] : vector<1x8x128xf32> to vector<8x128xf32>
      %71 = arith.addf %68, %70 : vector<8x128xf32>
      %c0_36 = arith.constant 0 : index
      %c0_37 = arith.constant 0 : index
      %72 = vector.load %arg7[%c0_36, %c0_37] : memref<8x128xf32, #tpu.memory_space<vmem>>, vector<8x128xf32>
      tpu.vector_store %arg7[%c0_36, %c0_37], %71 {strides = array<i32>} : memref<8x128xf32, #tpu.memory_space<vmem>>, vector<8x128xf32>,
      %c0_38 = arith.constant 0 : index
      %c0_39 = arith.constant 0 : index
      %73 = vector.load %arg8[%c0_38, %c0_39] : memref<8x128xf32, #tpu.memory_space<vmem>>, vector<8x128xf32>
      %74 = vector.shape_cast %43 : vector<8x128xf32> to vector<1x8x128xf32>
      %cst_40 = arith.constant dense<0.000000e+00> : vector<8x128xf32>
      %75 = vector.multi_reduction <add>, %74, %cst_40 [0] : vector<1x8x128xf32> to vector<8x128xf32>
      %76 = arith.addf %73, %75 : vector<8x128xf32>
      %c0_41 = arith.constant 0 : index
      %c0_42 = arith.constant 0 : index
      %77 = vector.load %arg8[%c0_41, %c0_42] : memref<8x128xf32, #tpu.memory_space<vmem>>, vector<8x128xf32>
      tpu.vector_store %arg8[%c0_41, %c0_42], %76 {strides = array<i32>} : memref<8x128xf32, #tpu.memory_space<vmem>>, vector<8x128xf32>,
    } else {
    }
    %53 = arith.extui %49 : i1 to i32
    %c0_i32_20 = arith.constant 0 : i32
    %54 = arith.cmpi ne, %53, %c0_i32_20 : i32
    scf.if %54 {
      %58 = tpu.iota {dimensions = array<i32: 0>} : vector<8x128xi32>
      %59 = tpu.iota {dimensions = array<i32: 1>} : vector<8x128xi32>
      %c128_i32 = arith.constant 128 : i32
      %60 = vector.broadcast %c128_i32 : i32 to vector<8x128xi32>
      %61 = arith.muli %58, %60 : vector<8x128xi32>
      %62 = vector.broadcast %47 : i32 to vector<8x128xi32>
      %63 = arith.addi %62, %61 : vector<8x128xi32>
      %64 = arith.addi %63, %59 : vector<8x128xi32>
      %c2048_i32_23 = arith.constant 2048 : i32
      %65 = vector.broadcast %c2048_i32_23 : i32 to vector<8x128xi32>
      %66 = arith.cmpi slt, %64, %65 : vector<8x128xi32>
      %cst_24 = arith.constant 0.000000e+00 : f32
      %67 = vector.broadcast %cst_24 : f32 to vector<8x128xf32>
      %68 = arith.select %66, %17, %67 : vector<8x128xi1>, vector<8x128xf32>
      %69 = arith.select %66, %4, %67 : vector<8x128xi1>, vector<8x128xf32>
      %70 = arith.select %66, %44, %67 : vector<8x128xi1>, vector<8x128xf32>
      %71 = arith.select %66, %43, %67 : vector<8x128xi1>, vector<8x128xf32>
      %c0_25 = arith.constant 0 : index
      %c0_26 = arith.constant 0 : index
      %72 = vector.load %arg5[%c0_25, %c0_26] : memref<8x128xf32, #tpu.memory_space<vmem>>, vector<8x128xf32>
      %73 = vector.shape_cast %68 : vector<8x128xf32> to vector<1x8x128xf32>
      %cst_27 = arith.constant dense<0.000000e+00> : vector<8x128xf32>
      %74 = vector.multi_reduction <add>, %73, %cst_27 [0] : vector<1x8x128xf32> to vector<8x128xf32>
      %75 = arith.addf %72, %74 : vector<8x128xf32>
      %c0_28 = arith.constant 0 : index
      %c0_29 = arith.constant 0 : index
      %76 = vector.load %arg5[%c0_28, %c0_29] : memref<8x128xf32, #tpu.memory_space<vmem>>, vector<8x128xf32>
      tpu.vector_store %arg5[%c0_28, %c0_29], %75 {strides = array<i32>} : memref<8x128xf32, #tpu.memory_space<vmem>>, vector<8x128xf32>,
      %c0_30 = arith.constant 0 : index
      %c0_31 = arith.constant 0 : index
      %77 = vector.load %arg6[%c0_30, %c0_31] : memref<8x128xf32, #tpu.memory_space<vmem>>, vector<8x128xf32>
      %78 = vector.shape_cast %69 : vector<8x128xf32> to vector<1x8x128xf32>
      %cst_32 = arith.constant dense<0.000000e+00> : vector<8x128xf32>
      %79 = vector.multi_reduction <add>, %78, %cst_32 [0] : vector<1x8x128xf32> to vector<8x128xf32>
      %80 = arith.addf %77, %79 : vector<8x128xf32>
      %c0_33 = arith.constant 0 : index
      %c0_34 = arith.constant 0 : index
      %81 = vector.load %arg6[%c0_33, %c0_34] : memref<8x128xf32, #tpu.memory_space<vmem>>, vector<8x128xf32>
      tpu.vector_store %arg6[%c0_33, %c0_34], %80 {strides = array<i32>} : memref<8x128xf32, #tpu.memory_space<vmem>>, vector<8x128xf32>,
      %c0_35 = arith.constant 0 : index
      %c0_36 = arith.constant 0 : index
      %82 = vector.load %arg7[%c0_35, %c0_36] : memref<8x128xf32, #tpu.memory_space<vmem>>, vector<8x128xf32>
      %83 = vector.shape_cast %70 : vector<8x128xf32> to vector<1x8x128xf32>
      %cst_37 = arith.constant dense<0.000000e+00> : vector<8x128xf32>
      %84 = vector.multi_reduction <add>, %83, %cst_37 [0] : vector<1x8x128xf32> to vector<8x128xf32>
      %85 = arith.addf %82, %84 : vector<8x128xf32>
      %c0_38 = arith.constant 0 : index
      %c0_39 = arith.constant 0 : index
      %86 = vector.load %arg7[%c0_38, %c0_39] : memref<8x128xf32, #tpu.memory_space<vmem>>, vector<8x128xf32>
      tpu.vector_store %arg7[%c0_38, %c0_39], %85 {strides = array<i32>} : memref<8x128xf32, #tpu.memory_space<vmem>>, vector<8x128xf32>,
      %c0_40 = arith.constant 0 : index
      %c0_41 = arith.constant 0 : index
      %87 = vector.load %arg8[%c0_40, %c0_41] : memref<8x128xf32, #tpu.memory_space<vmem>>, vector<8x128xf32>
      %88 = vector.shape_cast %71 : vector<8x128xf32> to vector<1x8x128xf32>
      %cst_42 = arith.constant dense<0.000000e+00> : vector<8x128xf32>
      %89 = vector.multi_reduction <add>, %88, %cst_42 [0] : vector<1x8x128xf32> to vector<8x128xf32>
      %90 = arith.addf %87, %89 : vector<8x128xf32>
      %c0_43 = arith.constant 0 : index
      %c0_44 = arith.constant 0 : index
      %91 = vector.load %arg8[%c0_43, %c0_44] : memref<8x128xf32, #tpu.memory_space<vmem>>, vector<8x128xf32>
      tpu.vector_store %arg8[%c0_43, %c0_44], %90 {strides = array<i32>} : memref<8x128xf32, #tpu.memory_space<vmem>>, vector<8x128xf32>,
    } else {
    }
    %c0_i32_21 = arith.constant 0 : i32
    %55 = arith.cmpi eq, %arg1, %c0_i32_21 : i32
    %56 = arith.extui %55 : i1 to i32
    %c0_i32_22 = arith.constant 0 : i32
    %57 = arith.cmpi ne, %56, %c0_i32_22 : i32
    scf.if %57 {
      %c0_23 = arith.constant 0 : index
      %c0_24 = arith.constant 0 : index
      %58 = vector.load %arg5[%c0_23, %c0_24] : memref<8x128xf32, #tpu.memory_space<vmem>>, vector<8x128xf32>
      %c0_25 = arith.constant 0 : index
      %c0_26 = arith.constant 0 : index
      %c0_27 = arith.constant 0 : index
      %c0_28 = arith.constant 0 : index
      %59 = vector.load %arg4[%c0_25, %c0_26, %c0_27, %c0_28] : memref<1x4x8x128xf32, #tpu.memory_space<vmem>>, vector<1x1x8x128xf32>
      %60 = vector.shape_cast %59 : vector<1x1x8x128xf32> to vector<8x128xf32>
      %61 = vector.shape_cast %58 : vector<8x128xf32> to vector<1x1x8x128xf32>
      tpu.vector_store %arg4[%c0_25, %c0_26, %c0_27, %c0_28], %61 {strides = array<i32>} : memref<1x4x8x128xf32, #tpu.memory_space<vmem>>, vector<1x1x8x128xf32>,
      %c0_29 = arith.constant 0 : index
      %c0_30 = arith.constant 0 : index
      %62 = vector.load %arg6[%c0_29, %c0_30] : memref<8x128xf32, #tpu.memory_space<vmem>>, vector<8x128xf32>
      %c0_31 = arith.constant 0 : index
      %c1 = arith.constant 1 : index
      %c0_32 = arith.constant 0 : index
      %c0_33 = arith.constant 0 : index
      %63 = vector.load %arg4[%c0_31, %c1, %c0_32, %c0_33] : memref<1x4x8x128xf32, #tpu.memory_space<vmem>>, vector<1x1x8x128xf32>
      %64 = vector.shape_cast %63 : vector<1x1x8x128xf32> to vector<8x128xf32>
      %65 = vector.shape_cast %62 : vector<8x128xf32> to vector<1x1x8x128xf32>
      tpu.vector_store %arg4[%c0_31, %c1, %c0_32, %c0_33], %65 {strides = array<i32>} : memref<1x4x8x128xf32, #tpu.memory_space<vmem>>, vector<1x1x8x128xf32>,
      %c0_34 = arith.constant 0 : index
      %c0_35 = arith.constant 0 : index
      %66 = vector.load %arg7[%c0_34, %c0_35] : memref<8x128xf32, #tpu.memory_space<vmem>>, vector<8x128xf32>
      %c0_36 = arith.constant 0 : index
      %c2 = arith.constant 2 : index
      %c0_37 = arith.constant 0 : index
      %c0_38 = arith.constant 0 : index
      %67 = vector.load %arg4[%c0_36, %c2, %c0_37, %c0_38] : memref<1x4x8x128xf32, #tpu.memory_space<vmem>>, vector<1x1x8x128xf32>
      %68 = vector.shape_cast %67 : vector<1x1x8x128xf32> to vector<8x128xf32>
      %69 = vector.shape_cast %66 : vector<8x128xf32> to vector<1x1x8x128xf32>
      tpu.vector_store %arg4[%c0_36, %c2, %c0_37, %c0_38], %69 {strides = array<i32>} : memref<1x4x8x128xf32, #tpu.memory_space<vmem>>, vector<1x1x8x128xf32>,
      %c0_39 = arith.constant 0 : index
      %c0_40 = arith.constant 0 : index
      %70 = vector.load %arg8[%c0_39, %c0_40] : memref<8x128xf32, #tpu.memory_space<vmem>>, vector<8x128xf32>
      %c0_41 = arith.constant 0 : index
      %c3 = arith.constant 3 : index
      %c0_42 = arith.constant 0 : index
      %c0_43 = arith.constant 0 : index
      %71 = vector.load %arg4[%c0_41, %c3, %c0_42, %c0_43] : memref<1x4x8x128xf32, #tpu.memory_space<vmem>>, vector<1x1x8x128xf32>
      %72 = vector.shape_cast %71 : vector<1x1x8x128xf32> to vector<8x128xf32>
      %73 = vector.shape_cast %70 : vector<8x128xf32> to vector<1x1x8x128xf32>
      tpu.vector_store %arg4[%c0_41, %c3, %c0_42, %c0_43], %73 {strides = array<i32>} : memref<1x4x8x128xf32, #tpu.memory_space<vmem>>, vector<1x1x8x128xf32>,
    } else {
    }
    return
  }
  func.func @transform_0(%arg0: i32, %arg1: i32) -> (i32, i32) {
    %c1_i32 = arith.constant 1 : i32
    %0 = arith.muli %arg0, %c1_i32 : i32
    %1 = arith.addi %0, %arg1 : i32
    %c1_i32_0 = arith.constant 1 : i32
    %2 = arith.minsi %1, %c1_i32_0 : i32
    %c0_i32 = arith.constant 0 : i32
    %c0_i32_1 = arith.constant 0 : i32
    return %2, %c0_i32 : i32, i32
  }
  func.func @transform_1(%arg0: i32, %arg1: i32) -> (i32, i32) {
    %c1_i32 = arith.constant 1 : i32
    %0 = arith.muli %arg0, %c1_i32 : i32
    %1 = arith.addi %0, %arg1 : i32
    %c1_i32_0 = arith.constant 1 : i32
    %2 = arith.minsi %1, %c1_i32_0 : i32
    %c0_i32 = arith.constant 0 : i32
    %c0_i32_1 = arith.constant 0 : i32
    return %2, %c0_i32 : i32, i32
  }
  func.func @transform_2(%arg0: i32, %arg1: i32) -> (i32, i32, i32, i32) {
    %c0_i32 = arith.constant 0 : i32
    %c0_i32_0 = arith.constant 0 : i32
    %c0_i32_1 = arith.constant 0 : i32
    %c0_i32_2 = arith.constant 0 : i32
    return %arg0, %c0_i32, %c0_i32_0, %c0_i32_1 : i32, i32, i32, i32
  }
}

</mosaic_0001>

<llo_original>
// kernel: dice_bce_loss.1
$region0: #{dice_bce_loss.1}
  #allocation0 [shape = 'u32[]', space=smem, size = 0x4, offset = 0x4, fixed_abs, tag = 'smem constant byte address 0x4 - core index']
  #allocation1 [shape = 'u32[144,128]{1,0:T(1,128)}', space=vmem, size = 0x12000, scoped, tag = 'internal scratch']
  #allocation2 [shape = 'f32[8,128]{1,0:T(8,128)}', space=vmem, size = 0x1000, scoped, tag = 'scratch operand']
  #allocation3 [shape = 'f32[8,128]{1,0:T(8,128)}', space=vmem, size = 0x1000, scoped, tag = 'scratch operand']
  #allocation4 [shape = 'f32[8,128]{1,0:T(8,128)}', space=vmem, size = 0x1000, scoped, tag = 'scratch operand']
  #allocation5 [shape = 'f32[8,128]{1,0:T(8,128)}', space=vmem, size = 0x1000, scoped, tag = 'scratch operand']
  %s0 = inlined_call_operand.vmem [shape: f32[16,128], index: 0, kind: input, shape index: {}]
  %s1 = inlined_call_operand.vmem [shape: f32[16,128], index: 1, kind: input, shape index: {}]
  %s2 = inlined_call_operand.vmem [shape: f32[2,4,8,128], index: 2, kind: output, shape index: {}]
  %s3 = sld [smem:[#allocation0]]
  $region57: #{dice_bce_loss.1} parent=0
    _
  %s5 = ssub.s32 1, %s3
  %s6 = scalar_select 0, %s5, %s3
  loop: start=0, step=1, limit=4
  $region2: #{dice_bce_loss.1} parent=0 // loop_pre_header
    _
  $region3: #{dice_bce_loss.1} parent=0 // loop_header
    %s8 = sphi 0, %s12
    %p9 = scmp.ge.s32.totalorder %s8, 4
    %s15 = sphi 0, %s27
    %s16 = sphi 0, %s23
    %s17 = sphi 0, %s15
    %s18 = sphi 0, %s16
    %s19 = sphi 0, %s17
    %s20 = sphi 0, %s18
    %s36 = sphi 0, %s38
    %s39 = sphi 0, %s36
    %s40 = sphi 0, %s39
    %s56 = sphi 0, %s40
    %s68 = sphi 0, %s70
    %s71 = sphi 0, %s68
    %s72 = sphi 0, %s71
    %s88 = sphi 0, %s72
    %s94 = sphi 0, %s96
    %s97 = sphi 0, %s94
    %s98 = sphi 0, %s97
    %s114 = sphi 0, %s98
  $region4: #{dice_bce_loss.1} parent=0 // loop_header_branch
    %11 = sbr.rel (%p9) target = $region8
  $region5: #{dice_bce_loss.1} parent=0 // loop_body
    %s13 = ssub.s32 %s8, 1
    %s14 = ssub.s32 %s8, 2
    %s21 = sadd.s32 1, %s16
    %p22 = scmp.ge.s32.totalorder %s21, 1
    %s23 = scalar_select %p22, 0, %s21
    %s24 = sadd.s32 1, %s15
    %s25 = scalar_select %p22, %s24, %s15
    %p26 = scmp.ge.s32.totalorder %s25, 2
    %s27 = scalar_select %p26, 0, %s25
    %s28 = sadd.s32 %s15, %s16
    %p29 = scmp.lt.s32.totalorder %s28, 1
    %s30 = scalar_select %p29, %s28, 1
    %s31 = sadd.s32 %s27, %s23
    %p32 = scmp.lt.s32.totalorder %s31, 1
    %s33 = scalar_select %p32, %s31, 1
    %s34 = ssub.s32 %s30, %s33
    %p35 = scmp.eq.s32.totalorder %s34, 0
    %s37 = sadd.s32 %s36, 1
    %s38 = scalar_select %p35, %s36, %s37
    %p41 = pneg %p35
    %p42 = scmp.eq.s32.totalorder %s8, 1
    %p43 = por %p41, %p42
    %p44 = scmp.ne.s32.totalorder %s36, %s39
    %p45 = scmp.eq.s32.totalorder %s8, 0
    %p46 = por %p44, %p45
    %p47 = scmp.ne.s32.totalorder %s36, %s39
    %p48 = scmp.eq.s32.totalorder %s13, 1
    %p49 = por %p47, %p48
    %p50 = scmp.ne.s32.totalorder %s39, %s40
    %p51 = scmp.eq.s32.totalorder %s13, 0
    %p52 = por %p50, %p51
    %p53 = scmp.ne.s32.totalorder %s39, %s40
    %p54 = scmp.eq.s32.totalorder %s14, 1
    %p55 = por %p53, %p54
    %p57 = scmp.ne.s32.totalorder %s40, %s56
    %p58 = scmp.eq.s32.totalorder %s14, 0
    %p59 = por %p57, %p58
    %s60 = sadd.s32 %s15, %s16
    %p61 = scmp.lt.s32.totalorder %s60, 1
    %s62 = scalar_select %p61, %s60, 1
    %s63 = sadd.s32 %s27, %s23
    %p64 = scmp.lt.s32.totalorder %s63, 1
    %s65 = scalar_select %p64, %s63, 1
    %s66 = ssub.s32 %s62, %s65
    %p67 = scmp.eq.s32.totalorder %s66, 0
    %s69 = sadd.s32 %s68, 1
    %s70 = scalar_select %p67, %s68, %s69
    %p73 = pneg %p67
    %p74 = scmp.eq.s32.totalorder %s8, 1
    %p75 = por %p73, %p74
    %p76 = scmp.ne.s32.totalorder %s68, %s71
    %p77 = scmp.eq.s32.totalorder %s8, 0
    %p78 = por %p76, %p77
    %p79 = scmp.ne.s32.totalorder %s68, %s71
    %p80 = scmp.eq.s32.totalorder %s13, 1
    %p81 = por %p79, %p80
    %p82 = scmp.ne.s32.totalorder %s71, %s72
    %p83 = scmp.eq.s32.totalorder %s13, 0
    %p84 = por %p82, %p83
    %p85 = scmp.ne.s32.totalorder %s71, %s72
    %p86 = scmp.eq.s32.totalorder %s14, 1
    %p87 = por %p85, %p86
    %p89 = scmp.ne.s32.totalorder %s72, %s88
    %p90 = scmp.eq.s32.totalorder %s14, 0
    %p91 = por %p89, %p90
    %s92 = ssub.s32 %s15, %s27
    %p93 = scmp.eq.s32.totalorder %s92, 0
    %s95 = sadd.s32 %s94, 1
    %s96 = scalar_select %p93, %s94, %s95
    %p99 = pneg %p93
    %p100 = scmp.eq.s32.totalorder %s8, 1
    %p101 = por %p99, %p100
    %p102 = scmp.ne.s32.totalorder %s94, %s97
    %p103 = scmp.eq.s32.totalorder %s8, 0
    %p104 = por %p102, %p103
    %p105 = scmp.ne.s32.totalorder %s94, %s97
    %p106 = scmp.eq.s32.totalorder %s13, 1
    %p107 = por %p105, %p106
    %p108 = scmp.ne.s32.totalorder %s97, %s98
    %p109 = scmp.eq.s32.totalorder %s13, 0
    %p110 = por %p108, %p109
    %p111 = scmp.ne.s32.totalorder %s97, %s98
    %p112 = scmp.eq.s32.totalorder %s14, 1
    %p113 = por %p111, %p112
    %p115 = scmp.ne.s32.totalorder %s98, %s114
    %p116 = scmp.eq.s32.totalorder %s14, 0
    %p117 = por %p115, %p116
    %p118 = scmp.le.s32.totalorder 1, %s8
    %p119 = scmp.lt.s32.totalorder %s8, 3
    %p120 = pnand %p118, %p119
    %p121 = pneg %p120
    // Predicated region
    $region9: #{dice_bce_loss.1} parent=5 // pred_check
      _
    $region10: #{dice_bce_loss.1} parent=5 // pred_check_branch
      %123 = sbr.rel (%p120) target = $region12
    $region11: #{dice_bce_loss.1} parent=5 // pred_region
      %s124 = ssub.s32 %s8, 1
    $region12: #{dice_bce_loss.1} parent=5 // pred_fallthru
      _
    %p125 = scmp.lt.s32.totalorder %s8, 2
    // Predicated region
    $region13: #{dice_bce_loss.1} parent=5 // pred_check
      %p126 = pneg %p125
    $region14: #{dice_bce_loss.1} parent=5 // pred_check_branch
      %128 = sbr.rel (%p126) target = $region16
    $region15: #{dice_bce_loss.1} parent=5 // pred_region
      // Predicated region
      $region17: #{dice_bce_loss.1} parent=15 // pred_check
        %p129 = pneg %p46
      $region18: #{dice_bce_loss.1} parent=15 // pred_check_branch
        %131 = sbr.rel (%p129) target = $region20
      $region19: #{dice_bce_loss.1} parent=15 // pred_region
        %s132 = sadd.s32 %s15, %s16
        %p133 = scmp.lt.s32.totalorder %s132, 1
        %s134 = scalar_select %p133, %s132, 1
        %p135 = scmp.lt.s32.totalorder %s134, 1
        %s136 = scalar_select %p135, %s134, 1
        %s137 = smul.addr %s136, 8
        %s138 = scalar_lea.vmem %s0, %s137
        %s139 = sadd.s32 %s15, %s16
        %p140 = scmp.lt.s32.totalorder %s139, 1
        %s141 = scalar_select %p140, %s139, 1
      $region20: #{dice_bce_loss.1} parent=15 // pred_fallthru
        _
      // Predicated region
      $region21: #{dice_bce_loss.1} parent=15 // pred_check
        %p142 = pneg %p78
      $region22: #{dice_bce_loss.1} parent=15 // pred_check_branch
        %144 = sbr.rel (%p142) target = $region24
      $region23: #{dice_bce_loss.1} parent=15 // pred_region
        %s145 = sadd.s32 %s15, %s16
        %p146 = scmp.lt.s32.totalorder %s145, 1
        %s147 = scalar_select %p146, %s145, 1
        %p148 = scmp.lt.s32.totalorder %s147, 1
        %s149 = scalar_select %p148, %s147, 1
        %s150 = smul.addr %s149, 8
        %s151 = scalar_lea.vmem %s1, %s150
        %s152 = sadd.s32 %s15, %s16
        %p153 = scmp.lt.s32.totalorder %s152, 1
        %s154 = scalar_select %p153, %s152, 1
      $region24: #{dice_bce_loss.1} parent=15 // pred_fallthru
        _
    $region16: #{dice_bce_loss.1} parent=5 // pred_fallthru
      _
    %p155 = scmp.le.s32.totalorder 1, %s8
    %p156 = scmp.lt.s32.totalorder %s8, 3
    %p157 = pnand %p155, %p156
    %p158 = pneg %p157
    // Predicated region
    $region25: #{dice_bce_loss.1} parent=5 // pred_check
      _
    $region26: #{dice_bce_loss.1} parent=5 // pred_check_branch
      %160 = sbr.rel (%p157) target = $region28
    $region27: #{dice_bce_loss.1} parent=5 // pred_region
      %s161 = ssub.s32 %s8, 1
      %s162 = sadd.s32 %s17, %s18
      %p163 = scmp.lt.s32.totalorder %s162, 1
      %s164 = scalar_select %p163, %s162, 1
      %p165 = scmp.lt.s32.totalorder %s164, 1
      %s166 = scalar_select %p165, %s164, 1
      %s167 = smul.addr %s166, 8
      %s168 = scalar_lea.vmem %s0, %s167
      %p169 = pneg %p52
      %p170 = pneg %p49
      %s171 = sadd.s32 %s17, %s18
      %p172 = scmp.lt.s32.totalorder %s171, 1
      %s173 = scalar_select %p172, %s171, 1
      %p174 = scmp.lt.s32.totalorder %s173, 1
      %s175 = scalar_select %p174, %s173, 1
      %s176 = smul.addr %s175, 8
      %s177 = scalar_lea.vmem %s1, %s176
      %p178 = pneg %p84
      %p179 = pneg %p81
      %p180 = pneg %p110
      %p181 = pneg %p107
      %p182 = scmp.lt.s32.totalorder %s17, 1
      %s183 = scalar_select %p182, %s17, 1
      %s184 = smul.addr %s183, 4
      %s185 = smul.addr %s184, 8
      %s186 = scalar_lea.vmem %s2, %s185
      %s187 = sadd.s32 %s17, %s18
      %p188 = scmp.lt.s32.totalorder %s187, 1
      %s189 = scalar_select %p188, %s187, 1
      %p190 = scmp.lt.s32.totalorder %s189, 1
      %s191 = scalar_select %p190, %s189, 1
      %s192 = smul.addr %s191, 8
      %s193 = scalar_lea.vmem %s0, %s192
      %s194 = sadd.s32 %s17, %s18
      %p195 = scmp.lt.s32.totalorder %s194, 1
      %s196 = scalar_select %p195, %s194, 1
      %s197 = sadd.s32 %s17, %s18
      %p198 = scmp.lt.s32.totalorder %s197, 1
      %s199 = scalar_select %p198, %s197, 1
      %p200 = scmp.lt.s32.totalorder %s199, 1
      %s201 = scalar_select %p200, %s199, 1
      %s202 = smul.addr %s201, 8
      %s203 = scalar_lea.vmem %s1, %s202
      %s204 = sadd.s32 %s17, %s18
      %p205 = scmp.lt.s32.totalorder %s204, 1
      %s206 = scalar_select %p205, %s204, 1
      %p207 = scmp.lt.s32.totalorder %s17, 1
      %s208 = scalar_select %p207, %s17, 1
      %s209 = smul.addr %s208, 4
      %s210 = smul.addr %s209, 8
      %s211 = scalar_lea.vmem %s2, %s210
      %p212 = scmp.eq.s32.totalorder %s18, 0
      // Predicated region
      $region29: #{dice_bce_loss.1} parent=27 // pred_check
        %p213 = pneg %p212
      $region30: #{dice_bce_loss.1} parent=27 // pred_check_branch
        %215 = sbr.rel (%p213) target = $region32
      $region31: #{dice_bce_loss.1} parent=27 // pred_region
        %216 = vst [vmem:[#allocation2] sm:$0xff] 0.0
        %217 = vst [vmem:[#allocation3] sm:$0xff] 0.0
        %218 = vst [vmem:[#allocation4] sm:$0xff] 0.0
        %219 = vst [vmem:[#allocation5] sm:$0xff] 0.0
      $region32: #{dice_bce_loss.1} parent=27 // pred_fallthru
        _
      %v220 = vld [vmem:[%s193] sm:$0xff]
      %v221 = vld [vmem:[%s203] sm:$0xff]
      %v222 = vand.u32 2147483647, %v220
      %v223 = vsub.f32 0.0, %v222
      %v224 = vmul.f32 %v223, 1.442695
      %v225 = vpow.pop %v224
      %v226 = vadd.f32 %v225, 1.0
      %v227 = vrcp.pop %v226
      %v228 = vmul.f32 1.0, %v227
      %vm229 = vcmp.ge.f32.partialorder %v220, 0.0
      %v230 = vsel %vm229, 1.0, %v225
      %v231 = vmul.f32 %v230, %v228
      %v232 = vlog2.pop %v226
      %v233 = vmul.f32 %v232, 0.6931472
      %v234 = vsub.f32 0.0, %v220
      %v235 = vmax.f32 %v234, 0.0
      %v236 = vadd.f32 %v235, %v233
      %v237 = vsub.f32 0.0, %v236
      %v238 = vmax.f32 %v237, -100.0
      %v239 = vmax.f32 %v220, 0.0
      %v240 = vadd.f32 %v239, %v233
      %v241 = vsub.f32 0.0, %v240
      %v242 = vmax.f32 %v241, -100.0
      %v243 = vmul.f32 %v221, %v238
      %v244 = vsub.f32 1.0, %v221
      %v245 = vmul.f32 %v244, %v242
      %v246 = vadd.f32 %v243, %v245
      %v247 = vsub.f32 0.0, %v246
      %v248 = vmul.f32 %v231, %v221
      %s249 = sadd.s32 %s17, %s18
      %s250 = smul.u32 %s249, 1024
      %s251 = sadd.s32 %s250, 1024
      %p252 = scmp.gt.s32.totalorder %s251, 2048
      %p253 = scmp.le.s32.totalorder %s251, 2048
      // Predicated region
      $region33: #{dice_bce_loss.1} parent=27 // pred_check
        %p254 = pneg %p253
      $region34: #{dice_bce_loss.1} parent=27 // pred_check_branch
        %256 = sbr.rel (%p254) target = $region36
      $region35: #{dice_bce_loss.1} parent=27 // pred_region
        %v257 = vld [vmem:[#allocation2] sm:$0xff]
        %v258 = vadd.f32 %v231, 0.0
        %v259 = vadd.f32 %v257, %v258
        %260 = vst [vmem:[#allocation2] sm:$0xff] %v259
        %v261 = vld [vmem:[#allocation3] sm:$0xff]
        %v262 = vadd.f32 %v221, 0.0
        %v263 = vadd.f32 %v261, %v262
        %264 = vst [vmem:[#allocation3] sm:$0xff] %v263
        %v265 = vld [vmem:[#allocation4] sm:$0xff]
        %v266 = vadd.f32 %v248, 0.0
        %v267 = vadd.f32 %v265, %v266
        %268 = vst [vmem:[#allocation4] sm:$0xff] %v267
        %v269 = vld [vmem:[#allocation5] sm:$0xff]
        %v270 = vadd.f32 %v247, 0.0
        %v271 = vadd.f32 %v269, %v270
        %272 = vst [vmem:[#allocation5] sm:$0xff] %v271
      $region36: #{dice_bce_loss.1} parent=27 // pred_fallthru
        _
      // Predicated region
      $region37: #{dice_bce_loss.1} parent=27 // pred_check
        %p273 = pneg %p252
      $region38: #{dice_bce_loss.1} parent=27 // pred_check_branch
        %275 = sbr.rel (%p273) target = $region40
      $region39: #{dice_bce_loss.1} parent=27 // pred_region
        %v276 = vlaneseq
        %v277 = vshrl.u32 %v276, 7
        %v278 = vlaneseq
        %v279 = vand.u32 %v278, 127
        %v280 = vmul.u32 %v277, 128
        %v281 = vstv %s250
        %v282 = vadd.s32 %v281, %v280
        %v283 = vadd.s32 %v282, %v279
        %vm284 = vcmp.lt.s32.totalorder %v283, 2048
        %v285 = vsel %vm284, %v231, 0.0
        %v286 = vsel %vm284, %v221, 0.0
        %v287 = vsel %vm284, %v248, 0.0
        %v288 = vsel %vm284, %v247, 0.0
        %v289 = vld [vmem:[#allocation2] sm:$0xff]
        %v290 = vadd.f32 %v285, 0.0
        %v291 = vadd.f32 %v289, %v290
        %292 = vst [vmem:[#allocation2] sm:$0xff] %v291
        %v293 = vld [vmem:[#allocation3] sm:$0xff]
        %v294 = vadd.f32 %v286, 0.0
        %v295 = vadd.f32 %v293, %v294
        %296 = vst [vmem:[#allocation3] sm:$0xff] %v295
        %v297 = vld [vmem:[#allocation4] sm:$0xff]
        %v298 = vadd.f32 %v287, 0.0
        %v299 = vadd.f32 %v297, %v298
        %300 = vst [vmem:[#allocation4] sm:$0xff] %v299
        %v301 = vld [vmem:[#allocation5] sm:$0xff]
        %v302 = vadd.f32 %v288, 0.0
        %v303 = vadd.f32 %v301, %v302
        %304 = vst [vmem:[#allocation5] sm:$0xff] %v303
      $region40: #{dice_bce_loss.1} parent=27 // pred_fallthru
        _
      // Predicated region
      $region41: #{dice_bce_loss.1} parent=27 // pred_check
        %p305 = pneg %p212
      $region42: #{dice_bce_loss.1} parent=27 // pred_check_branch
        %307 = sbr.rel (%p305) target = $region44
      $region43: #{dice_bce_loss.1} parent=27 // pred_region
        %v308 = vld [vmem:[#allocation2] sm:$0xff]
        %309 = vst [vmem:[%s211] sm:$0xff] %v308
        %v310 = vld [vmem:[#allocation3] sm:$0xff]
        %s311 = scalar_lea.vmem %s211, 8
        %312 = vst [vmem:[%s311] sm:$0xff] %v310
        %v313 = vld [vmem:[#allocation4] sm:$0xff]
        %s314 = scalar_lea.vmem %s211, 16
        %315 = vst [vmem:[%s314] sm:$0xff] %v313
        %v316 = vld [vmem:[#allocation5] sm:$0xff]
        %s317 = scalar_lea.vmem %s211, 24
        %318 = vst [vmem:[%s317] sm:$0xff] %v316
      $region44: #{dice_bce_loss.1} parent=27 // pred_fallthru
        _
      %p319 = scmp.lt.s32.totalorder %s17, 1
      %s320 = scalar_select %p319, %s17, 1
      %s321 = smul.addr %s320, 4
      %s322 = smul.addr %s321, 8
      %s323 = scalar_lea.vmem %s2, %s322
      // Predicated region
      $region45: #{dice_bce_loss.1} parent=27 // pred_check
        %p324 = pneg %p107
      $region46: #{dice_bce_loss.1} parent=27 // pred_check_branch
        %326 = sbr.rel (%p324) target = $region48
      $region47: #{dice_bce_loss.1} parent=27 // pred_region
        _
      $region48: #{dice_bce_loss.1} parent=27 // pred_fallthru
        _
    $region28: #{dice_bce_loss.1} parent=5 // pred_fallthru
      _
    %p327 = scmp.le.s32.totalorder 2, %s8
    // Predicated region
    $region49: #{dice_bce_loss.1} parent=5 // pred_check
      %p328 = pneg %p327
    $region50: #{dice_bce_loss.1} parent=5 // pred_check_branch
      %330 = sbr.rel (%p328) target = $region52
    $region51: #{dice_bce_loss.1} parent=5 // pred_region
      %s331 = ssub.s32 %s8, 2
      // Predicated region
      $region53: #{dice_bce_loss.1} parent=51 // pred_check
        %p332 = pneg %p113
      $region54: #{dice_bce_loss.1} parent=51 // pred_check_branch
        %334 = sbr.rel (%p332) target = $region56
      $region55: #{dice_bce_loss.1} parent=51 // pred_region
        %p335 = scmp.lt.s32.totalorder %s19, 1
        %s336 = scalar_select %p335, %s19, 1
        %s337 = smul.addr %s336, 4
        %s338 = smul.addr %s337, 8
        %s339 = scalar_lea.vmem %s2, %s338
      $region56: #{dice_bce_loss.1} parent=51 // pred_fallthru
        _
    $region52: #{dice_bce_loss.1} parent=5 // pred_fallthru
      _
  $region6: #{dice_bce_loss.1} parent=0 // loop_footer
    %s12 = sadd.s32 1, %s8
  $region7: #{dice_bce_loss.1} parent=0 // loop_footer_branch
    %7 = sbr.rel target = $region3
  $region8: #{dice_bce_loss.1} parent=0 // loop_exit
    _

</llo_original>
